<compile_context>
chip_gen: v7x
topology: tpu7x:2x2x1
jax: 0.10.0
libtpu: 0.0.40
codegen_flags: <defaults>
</compile_context>

<pallas_src>
import functools
import math

import jax
import jax.numpy as jnp
from jax import lax
from jax.experimental import pallas as pl
from jax.experimental.pallas import tpu as pltpu


def _round_up(a: int, b: int) -> int:
    return -(-a // b) * b


def _agg_kernel(x_ref, o_ref, *, oper, sg, ts, init_val):
    """x_ref: (tn, ts, DG) input tile; o_ref: (tn, DG) accumulator/output."""
    si = pl.program_id(1)

    # --- init the (resident) output accumulator on the first S step ---------
    @pl.when(si == 0)
    def _init():
        o_ref[...] = jnp.full(o_ref.shape, init_val, o_ref.dtype)

    # --- accumulate this S tile in the accumulation dtype -------------------
    x = x_ref[...].astype(o_ref.dtype)                    # (tn, ts, DG)

    if sg % ts != 0:  # static check: mask padded S rows of the last tile
        s_idx = si * ts + lax.broadcasted_iota(jnp.int32, x.shape, 1)
        x = jnp.where(s_idx < sg, x, jnp.asarray(init_val, o_ref.dtype))

    if oper == "max":
        o_ref[...] = jnp.maximum(o_ref[...], jnp.max(x, axis=1))
    else:
        o_ref[...] = o_ref[...] + jnp.sum(x, axis=1)


def _vmem_capacity_bytes() -> int:
    try:
        cap = getattr(pltpu.get_tpu_info(), "vmem_capacity_bytes", None)
        if cap:
            return int(cap)
    except Exception:
        pass
    return 64 * 1024 * 1024  # conservative default (v7x per-TC VMEM)


def aggregator(x: jax.Array, oper: str = "mean") -> jax.Array:
    """Pallas equivalent of Aggregator(oper)(x, dim=2): (B, C, S, D) -> (B, C, D)."""
    assert oper in ("mean", "sum", "max")
    B, C, S, D = x.shape
    N = B * C
    itemsize = x.dtype.itemsize

    # ---- lane-density fold (relaxed: largest g dividing both S and 128//D) -
    if 0 < D < 128 and 128 % D == 0:
        g = math.gcd(S, 128 // D)
    else:
        g = 1
    SG = S // g
    DG = g * D
    x3 = x.reshape(N, SG, DG)                             # free (contiguous) reshape

    # ---- accumulation dtype & identity element ------------------------------
    if jnp.issubdtype(x.dtype, jnp.floating) or oper == "mean":
        acc_dtype = jnp.float32
        init_val = -jnp.inf if oper == "max" else 0.0
    else:
        acc_dtype = jnp.int32
        init_val = jnp.iinfo(jnp.int32).min if oper == "max" else 0
    acc_itemsize = jnp.dtype(acc_dtype).itemsize

    # ---- tile selection (generation-tuned input double-buffer budget) -------
    vmem_cap = _vmem_capacity_bytes()
    budget = min(32 << 20, int(vmem_cap * 0.4))           # 2x input tiles
    dg_pad = _round_up(DG, 128)                           # lane padding in VMEM
    sub = {1: 32, 2: 16}.get(itemsize, 8)                 # sublane packing granule

    if N <= 8:
        tn_hi = N
    else:
        tn_hi = _round_up(N, 8)
        if N >= 16:
            # keep >= 2 blocks along the parallel axis (v7x has 2 TensorCores)
            tn_hi = min(tn_hi, max(8, _round_up((N + 1) // 2, 8)))

    full_row_bytes = max(1, SG * dg_pad * itemsize)       # one N-row at ts = SG
    if N <= 8:
        tn = N
    else:
        tn_fit = (budget // (2 * full_row_bytes) // 8) * 8
        tn = max(8, min(tn_hi, tn_fit))

    if 2 * tn * full_row_bytes <= budget:
        ts = SG                                           # one-pass reduction
    else:
        ts_fit = budget // max(1, 2 * tn * dg_pad * itemsize)
        if SG <= sub:
            ts = SG
        else:
            ts = min(SG, max(8, (ts_fit // sub) * sub))   # sublane-aligned

    n_n = pl.cdiv(N, tn)
    n_s = pl.cdiv(SG, ts)

    # explicit scoped-VMEM limit with headroom (double-buffered in + out)
    in_tile = tn * _round_up(ts, sub) * dg_pad * itemsize
    out_tile = _round_up(tn, 8) * dg_pad * acc_itemsize
    need = 2 * in_tile + 2 * out_tile + (4 << 20)
    vmem_limit = min(int(vmem_cap * 0.9), max(need, 16 << 20))

    kernel = functools.partial(
        _agg_kernel, oper=oper, sg=SG, ts=ts, init_val=init_val)

    cost = pl.CostEstimate(
        flops=int(N * S * D),
        transcendentals=0,
        bytes_accessed=int(N * S * D * itemsize + N * DG * acc_itemsize))

    out = pl.pallas_call(
        kernel,
        out_shape=jax.ShapeDtypeStruct((N, DG), acc_dtype),
        grid=(n_n, n_s),
        in_specs=[pl.BlockSpec((tn, ts, DG), lambda n, s: (n, s, 0))],
        out_specs=pl.BlockSpec((tn, DG), lambda n, s: (n, 0)),
        compiler_params=pltpu.CompilerParams(
            dimension_semantics=("parallel", "arbitrary"),
            vmem_limit_bytes=int(vmem_limit)),
        cost_estimate=cost,
    )(x3)

    # ---- wrapper-side lane-group combine + mean scale (tiny vs the stream) --
    if g > 1:
        out = out.reshape(N, g, D)
        out = jnp.max(out, axis=1) if oper == "max" else jnp.sum(out, axis=1)
    if oper == "mean":
        out = out * jnp.asarray(1.0 / S, out.dtype)
    return out.astype(x.dtype).reshape(B, C, D)


if __name__ == "__main__":
    key = jax.random.PRNGKey(0)

    ref_fns = (
        ("mean", lambda a: jnp.mean(a, axis=2)),
        ("sum", lambda a: jnp.sum(a, axis=2)),
        ("max", lambda a: jnp.max(a, axis=2)),
    )

    ok = True
    for shape in ((2, 4, 16, 16), (2, 3, 12, 16)):
        B, C, S, D = shape
        x = jax.random.normal(key, shape, dtype=jnp.float32)
        for oper, ref_fn in ref_fns:
            out = jax.block_until_ready(aggregator(x, oper))
            ref = ref_fn(x)
            if out.shape != (B, C, D):
                ok = False
            if not jnp.allclose(out, ref, atol=1e-5, rtol=1e-5):
                ok = False

    if ok:
        print("KERNEL_OK")
</pallas_src>

<mosaic_0001>
module attributes {stable_mosaic.version = 11 : i64} {
  func.func @_agg_kernel(%arg0: i32, %arg1: i32, %arg2: memref<8x2x128xf32, #tpu.memory_space<vmem>>, %arg3: memref<8x128xf32, #tpu.memory_space<vmem>>) attributes {dimension_semantics = [#tpu.dimension_semantics<parallel>, #tpu.dimension_semantics<arbitrary>], iteration_bounds = array<i64: 1, 1>, scalar_prefetch = 0 : i64, scratch_operands = 0 : i64, tpu.core_type = #tpu.core_type<tc>, window_params = [{transform_indices = @transform_0, window_bounds = array<i64: 8, 2, 128>}, {transform_indices = @transform_1, window_bounds = array<i64: 8, 128>}]} {
    %c0_i32 = arith.constant 0 : i32
    %0 = arith.cmpi eq, %arg1, %c0_i32 : i32
    %1 = arith.extui %0 : i1 to i32
    %c0_i32_0 = arith.constant 0 : i32
    %2 = arith.cmpi ne, %1, %c0_i32_0 : i32
    scf.if %2 {
      %cst_7 = arith.constant 0.000000e+00 : f32
      %8 = vector.broadcast %cst_7 : f32 to vector<8x128xf32>
      %c0_8 = arith.constant 0 : index
      %c0_9 = arith.constant 0 : index
      %9 = vector.load %arg3[%c0_8, %c0_9] : memref<8x128xf32, #tpu.memory_space<vmem>>, vector<8x128xf32>
      tpu.vector_store %arg3[%c0_8, %c0_9], %8 {strides = array<i32>} : memref<8x128xf32, #tpu.memory_space<vmem>>, vector<8x128xf32>,
    } else {
    }
    %c0 = arith.constant 0 : index
    %c0_1 = arith.constant 0 : index
    %c0_2 = arith.constant 0 : index
    %3 = vector.load %arg2[%c0, %c0_1, %c0_2] : memref<8x2x128xf32, #tpu.memory_space<vmem>>, vector<8x2x128xf32>
    %c0_3 = arith.constant 0 : index
    %c0_4 = arith.constant 0 : index
    %4 = vector.load %arg3[%c0_3, %c0_4] : memref<8x128xf32, #tpu.memory_space<vmem>>, vector<8x128xf32>
    %cst = arith.constant dense<0.000000e+00> : vector<8x128xf32>
    %5 = vector.multi_reduction <add>, %3, %cst [1] : vector<8x2x128xf32> to vector<8x128xf32>
    %6 = arith.addf %4, %5 : vector<8x128xf32>
    %c0_5 = arith.constant 0 : index
    %c0_6 = arith.constant 0 : index
    %7 = vector.load %arg3[%c0_5, %c0_6] : memref<8x128xf32, #tpu.memory_space<vmem>>, vector<8x128xf32>
    tpu.vector_store %arg3[%c0_5, %c0_6], %6 {strides = array<i32>} : memref<8x128xf32, #tpu.memory_space<vmem>>, vector<8x128xf32>,
    return
  }
  func.func @transform_0(%arg0: i32, %arg1: i32) -> (i32, i32, i32) {
    %c0_i32 = arith.constant 0 : i32
    %c0_i32_0 = arith.constant 0 : i32
    return %arg0, %arg1, %c0_i32 : i32, i32, i32
  }
  func.func @transform_1(%arg0: i32, %arg1: i32) -> (i32, i32) {
    %c0_i32 = arith.constant 0 : i32
    %c0_i32_0 = arith.constant 0 : i32
    return %arg0, %c0_i32 : i32, i32
  }
}

</mosaic_0001>

<llo_original>
// kernel: tpu_custom_call.1
$region0: #{tpu_custom_call.1}
  #allocation0 [shape = 'u32[]', space=smem, size = 0x4, offset = 0x4, fixed_abs, tag = 'smem constant byte address 0x4 - core index']
  #allocation1 [shape = 'u32[144,128]{1,0:T(1,128)}', space=vmem, size = 0x12000, scoped, tag = 'internal scratch']
  %s0 = inlined_call_operand.hbm [shape: f32[8,2,128], index: 0, kind: input, shape index: {}]
  %s1 = inlined_call_operand.hbm [shape: f32[8,128], index: 1, kind: output, shape index: {}]
  %s2 = sld [smem:[#allocation0]]
  $region22: #{tpu_custom_call.1} parent=0
    _
  %s4 = ssub.s32 1, %s2
  %s5 = scalar_select 0, %s4, %s2
  $region1: #{tpu_custom_call.1} parent=0
    #allocation2 [shape = 'u8[8192]{0}', space=vmem, size = 0x2000, scoped, tag = 'input window, operand 0, single buffered']
    #allocation3 [shape = 's32[1]{0}', space=sflag, size = 0x4, scoped, tag = 'scoped memory for tpu_custom_call.1']
    #allocation4 [shape = 's32[1]{0}', space=sflag, size = 0x4, scoped, tag = 'scoped memory for tpu_custom_call.1']
    #allocation5 [shape = 'u8[4096]{0}', space=vmem, size = 0x1000, scoped, tag = 'output window, operand 0, single buffered']
    %6 = vsyncpa [#allocation3], 0
    %7 = vsyncpa [#allocation4], 0
    // Predicated region
    $region2: #{tpu_custom_call.1} parent=1 // pred_check
      _
    $region3: #{tpu_custom_call.1} parent=1 // pred_check_branch
      %9 = sbr.rel (0) target = $region5
    $region4: #{tpu_custom_call.1} parent=1 // pred_region
      %s11 = ssub.s32 256, 256
      %12 = vsyncadd [#allocation3], %s11
      %s13 = sshll.u32 [#allocation2], 4
      %s14 = int_to_ptr.vmem [resolvable:$true] %s13
      %19 = dma.hbm_to_vmem [thread:$0]  %s0, 256, %s14, [#allocation3], 32, 32, 2
    $region5: #{tpu_custom_call.1} parent=1 // pred_fallthru
      _
    // Predicated region
    $region6: #{tpu_custom_call.1} parent=1 // pred_check
      _
    $region7: #{tpu_custom_call.1} parent=1 // pred_check_branch
      %21 = sbr.rel (0) target = $region9
    $region8: #{tpu_custom_call.1} parent=1 // pred_region
      %22 = dma.done [#allocation3], 256
    $region9: #{tpu_custom_call.1} parent=1 // pred_fallthru
      _
    %p23 = scmp.eq.s32.totalorder 0, 0
    // Predicated region
    $region10: #{tpu_custom_call.1} parent=1 // pred_check
      %p24 = pneg %p23
    $region11: #{tpu_custom_call.1} parent=1 // pred_check_branch
      %26 = sbr.rel (%p24) target = $region13
    $region12: #{tpu_custom_call.1} parent=1 // pred_region
      %27 = vst [vmem:[#allocation5] sm:$0xff] 0.0
    $region13: #{tpu_custom_call.1} parent=1 // pred_fallthru
      _
    %v28 = vld [vmem:[#allocation2] sm:$0x3]
    %v29 = vld [vmem:[#allocation2 + $0x2] sm:$0x3]
    %v30 = vld [vmem:[#allocation2 + $0x4] sm:$0x3]
    %v31 = vld [vmem:[#allocation2 + $0x6] sm:$0x3]
    %v32 = vld [vmem:[#allocation2 + $0x8] sm:$0x3]
    %v33 = vld [vmem:[#allocation2 + $0xa] sm:$0x3]
    %v34 = vld [vmem:[#allocation2 + $0xc] sm:$0x3]
    %v35 = vld [vmem:[#allocation2 + $0xe] sm:$0x3]
    %v36 = vld [vmem:[#allocation5] sm:$0xff]
    %vm37 = vcmask 1041408
    %v38 = vsel %vm37, %v28, 0.0
    %v39 = vrot.slane %v38, 4
    %v40 = vadd.f32 %v38, %v39
    %v41 = vrot.slane %v40, 2
    %v42 = vadd.f32 %v40, %v41
    %v43 = vrot.slane %v42, 1
    %v44 = vadd.f32 %v42, %v43
    %v45 = vsel %vm37, %v29, 0.0
    %v46 = vrot.slane %v45, 4
    %v47 = vadd.f32 %v45, %v46
    %v48 = vrot.slane %v47, 2
    %v49 = vadd.f32 %v47, %v48
    %v50 = vrot.slane %v49, 1
    %v51 = vadd.f32 %v49, %v50
    %v52 = vsel %vm37, %v30, 0.0
    %v53 = vrot.slane %v52, 4
    %v54 = vadd.f32 %v52, %v53
    %v55 = vrot.slane %v54, 2
    %v56 = vadd.f32 %v54, %v55
    %v57 = vrot.slane %v56, 1
    %v58 = vadd.f32 %v56, %v57
    %v59 = vsel %vm37, %v31, 0.0
    %v60 = vrot.slane %v59, 4
    %v61 = vadd.f32 %v59, %v60
    %v62 = vrot.slane %v61, 2
    %v63 = vadd.f32 %v61, %v62
    %v64 = vrot.slane %v63, 1
    %v65 = vadd.f32 %v63, %v64
    %v66 = vsel %vm37, %v32, 0.0
    %v67 = vrot.slane %v66, 4
    %v68 = vadd.f32 %v66, %v67
    %v69 = vrot.slane %v68, 2
    %v70 = vadd.f32 %v68, %v69
    %v71 = vrot.slane %v70, 1
    %v72 = vadd.f32 %v70, %v71
    %v73 = vsel %vm37, %v33, 0.0
    %v74 = vrot.slane %v73, 4
    %v75 = vadd.f32 %v73, %v74
    %v76 = vrot.slane %v75, 2
    %v77 = vadd.f32 %v75, %v76
    %v78 = vrot.slane %v77, 1
    %v79 = vadd.f32 %v77, %v78
    %v80 = vsel %vm37, %v34, 0.0
    %v81 = vrot.slane %v80, 4
    %v82 = vadd.f32 %v80, %v81
    %v83 = vrot.slane %v82, 2
    %v84 = vadd.f32 %v82, %v83
    %v85 = vrot.slane %v84, 1
    %v86 = vadd.f32 %v84, %v85
    %v87 = vsel %vm37, %v35, 0.0
    %v88 = vrot.slane %v87, 4
    %v89 = vadd.f32 %v87, %v88
    %v90 = vrot.slane %v89, 2
    %v91 = vadd.f32 %v89, %v90
    %v92 = vrot.slane %v91, 1
    %v93 = vadd.f32 %v91, %v92
    %vm102 = vcmask 1041409
    %v103 = vsel %vm102, %v51, %v44
    %vm104 = vcmask 1042434
    %v105 = vsel %vm104, %v58, %v103
    %vm106 = vcmask 1043459
    %v107 = vsel %vm106, %v65, %v105
    %vm108 = vcmask 1044484
    %v109 = vsel %vm108, %v72, %v107
    %vm110 = vcmask 1045509
    %v111 = vsel %vm110, %v79, %v109
    %vm112 = vcmask 1046534
    %v113 = vsel %vm112, %v86, %v111
    %vm114 = vcmask 1047559
    %v115 = vsel %vm114, %v93, %v113
    %v117 = vadd.f32 %v36, %v115
    %118 = vst [vmem:[#allocation5] sm:$0xff] %v117
    // Predicated region
    $region14: #{tpu_custom_call.1} parent=1 // pred_check
      _
    $region15: #{tpu_custom_call.1} parent=1 // pred_check_branch
      %120 = sbr.rel (0) target = $region17
    $region16: #{tpu_custom_call.1} parent=1 // pred_region
      %s122 = ssub.s32 128, 128
      %123 = vsyncadd [#allocation4], %s122
      %s125 = sshll.u32 [#allocation5], 4
      %s126 = int_to_ptr.vmem [resolvable:$true] %s125
      %128 = dma.vmem_to_hbm [thread:$0]  %s126, 128, %s1, [#allocation4]
    $region17: #{tpu_custom_call.1} parent=1 // pred_fallthru
      _
    // Predicated region
    $region18: #{tpu_custom_call.1} parent=1 // pred_check
      _
    $region19: #{tpu_custom_call.1} parent=1 // pred_check_branch
      %130 = sbr.rel (0) target = $region21
    $region20: #{tpu_custom_call.1} parent=1 // pred_region
      %131 = dma.done [#allocation4], 128
    $region21: #{tpu_custom_call.1} parent=1 // pred_fallthru
      _
    %132 = vsyncpa [#allocation3], 1
    %133 = vsyncpa [#allocation4], 1

</llo_original>
